<compile_context>
chip_gen: v6e
topology: v6e:2x2x1
jax: 0.10.0
libtpu: 0.0.40
codegen_flags: <defaults>
</compile_context>

<pallas_src>
import functools
import math

import jax
import jax.numpy as jnp
from jax.experimental import pallas as pl
from jax.experimental.pallas import tpu as pltpu

LANE = 128      # vreg lane width (last dim)
SUBLANE = 8     # f32 sublanes (second-to-last dim)


def _round_up(a, b):
    return (a + b - 1) // b * b


def _choose_tiles(rows, hw, itemsize, target_bytes=1 << 20):
    """Pick (row_tile, lane_tile): lane/sublane-dense, ~1 MiB per block."""
    tl = min(_round_up(hw, LANE), 2048)
    rows_for_target = max(SUBLANE, target_bytes // (tl * itemsize))
    tr = min(_round_up(rows, SUBLANE), (rows_for_target // SUBLANE) * SUBLANE)
    return max(tr, SUBLANE), tl


def _row_mean_kernel(x_ref, mean_ref, *, inv_hw):
    """Accumulate per-row (instance) spatial means over the HW grid axis."""
    j = pl.program_id(1)

    @pl.when(j == 0)
    def _():
        mean_ref[...] = jnp.zeros_like(mean_ref)

    # f32 accumulation regardless of input dtype (matches PyTorch's mean).
    mean_ref[...] += jnp.sum(x_ref[...].astype(jnp.float32), axis=1, keepdims=True)

    @pl.when(j == pl.num_programs(1) - 1)
    def _():
        mean_ref[...] *= inv_hw


def _apply_kernel(g_ref, b_ref, x_ref, o_ref):
    """y = gamma[row] * x + beta[row] over a lane/sublane-dense (TR, TL) tile."""
    o_ref[...] = (g_ref[...] * x_ref[...].astype(jnp.float32)
                  + b_ref[...]).astype(o_ref.dtype)


def adain_forward(x_nchw, w1, b1, w2, b2):
    """x_nchw: (B, C, H, W); w1: (2C, C); b1: (2C,); w2: (2C, 2C); b2: (2C,)."""
    B, C, H, W = x_nchw.shape
    HW = H * W
    R = B * C

    TR, TL = _choose_tiles(R, HW, x_nchw.dtype.itemsize)
    R_pad = _round_up(R, TR)
    HW_pad = _round_up(HW, TL)

    x2d = x_nchw.reshape(R, HW)
    if (R_pad, HW_pad) != (R, HW):
        x2d = jnp.pad(x2d, ((0, R_pad - R), (0, HW_pad - HW)))

    n_row = R_pad // TR
    n_hw = HW_pad // TL

    # ---- pass 1 (Pallas): per-(b,c) spatial means, f32 accumulation ----
    mean = pl.pallas_call(
        functools.partial(_row_mean_kernel, inv_hw=1.0 / HW),
        out_shape=jax.ShapeDtypeStruct((R_pad, 1), jnp.float32),
        grid_spec=pltpu.PrefetchScalarGridSpec(
            num_scalar_prefetch=0,
            grid=(n_row, n_hw),
            in_specs=[pl.BlockSpec((TR, TL), lambda i, j: (i, j))],
            out_specs=pl.BlockSpec((TR, 1), lambda i, j: (i, 0)),
        ),
        compiler_params=pltpu.CompilerParams(
            dimension_semantics=("parallel", "arbitrary"),
            vmem_limit_bytes=32 * 1024 * 1024,
        ),
    )(x2d)

    # ---- style MLP: tiny batched matmuls in plain JAX (negligible FLOPs) ----
    # WSConv2d scales folded into the weights once (algebraically identical).
    scale1 = math.sqrt(2.0 / (C * 1 * 1))
    scale2 = math.sqrt(2.0 / (2 * C * 1 * 1))
    w1s = (w1 * scale1).astype(jnp.float32)
    w2s = (w2 * scale2).astype(jnp.float32)
    m = mean[:R, 0].reshape(B, C)                      # (B, C)
    h = m @ w1s.T + b1.astype(jnp.float32)             # (B, 2C)
    h = jnp.where(h > 0, h, 0.2 * h)                   # LeakyReLU(0.2)
    style = h @ w2s.T + b2.astype(jnp.float32)         # (B, 2C)
    gamma = style[:, :C].reshape(R, 1)
    beta = style[:, C:].reshape(R, 1)
    if R_pad != R:
        gamma = jnp.pad(gamma, ((0, R_pad - R), (0, 0)))
        beta = jnp.pad(beta, ((0, R_pad - R), (0, 0)))

    # ---- pass 2 (Pallas): HBM-bound streaming apply y = gamma*x + beta ----
    out = pl.pallas_call(
        _apply_kernel,
        out_shape=jax.ShapeDtypeStruct((R_pad, HW_pad), x_nchw.dtype),
        grid_spec=pltpu.PrefetchScalarGridSpec(
            num_scalar_prefetch=0,
            grid=(n_row, n_hw),
            in_specs=[
                pl.BlockSpec((TR, 1), lambda i, j: (i, 0)),    # gamma (per-row)
                pl.BlockSpec((TR, 1), lambda i, j: (i, 0)),    # beta  (per-row)
                pl.BlockSpec((TR, TL), lambda i, j: (i, j)),   # x tile
            ],
            out_specs=pl.BlockSpec((TR, TL), lambda i, j: (i, j)),
        ),
        compiler_params=pltpu.CompilerParams(
            dimension_semantics=("parallel", "parallel"),
            vmem_limit_bytes=32 * 1024 * 1024,
        ),
    )(gamma, beta, x2d)

    if (R_pad, HW_pad) != (R, HW):
        out = out[:R, :HW]
    return out.reshape(B, C, H, W)


def adain_ref(x, w1, b1, w2, b2):
    """Pure-JAX reference mirroring the PyTorch module."""
    B, C, H, W = x.shape
    scale1 = math.sqrt(2.0 / C)
    scale2 = math.sqrt(2.0 / (2 * C))
    m = x.mean(axis=(2, 3))                                  # (B, C)
    h = (m * scale1) @ w1.T + b1                             # (B, 2C)
    h = jnp.where(h > 0, h, 0.2 * h)
    style = (h * scale2) @ w2.T + b2                         # (B, 2C)
    gamma = style[:, :C][:, :, None, None]
    beta = style[:, C:][:, :, None, None]
    return gamma * x + beta


if __name__ == "__main__":
    B, C, H, W = 2, 4, 16, 16

    key = jax.random.PRNGKey(0)
    kx, kw1, kw2 = jax.random.split(key, 3)

    x = jax.random.normal(kx, (B, C, H, W), dtype=jnp.float32)

    # PyTorch init: nn.init.normal_(weight, 0, 1), bias = 0.
    # 1x1 conv weights (out_ch, in_ch, 1, 1) stored as (out_ch, in_ch).
    w1 = jax.random.normal(kw1, (2 * C, C), dtype=jnp.float32)
    b1 = jnp.zeros((2 * C,), dtype=jnp.float32)
    w2 = jax.random.normal(kw2, (2 * C, 2 * C), dtype=jnp.float32)
    b2 = jnp.zeros((2 * C,), dtype=jnp.float32)

    out = adain_forward(x, w1, b1, w2, b2)
    out = jax.block_until_ready(out)

    ref = adain_ref(x, w1, b1, w2, b2)
    assert out.shape == (B, C, H, W)
    assert jnp.allclose(out, ref, atol=1e-5, rtol=1e-5), "mismatch vs reference"

    print("KERNEL_OK")
</pallas_src>

<mosaic_0001>
module attributes {stable_mosaic.version = 11 : i64} {
  func.func @_row_mean_kernel(%arg0: i32, %arg1: i32, %arg2: memref<8x256xf32, #tpu.memory_space<vmem>>, %arg3: memref<8x1xf32, #tpu.memory_space<vmem>>) attributes {dimension_semantics = [#tpu.dimension_semantics<parallel>, #tpu.dimension_semantics<arbitrary>], iteration_bounds = array<i64: 1, 1>, scalar_prefetch = 0 : i64, scratch_operands = 0 : i64, tpu.core_type = #tpu.core_type<tc>, window_params = [{transform_indices = @transform_0, window_bounds = array<i64: 8, 256>}, {transform_indices = @transform_1, window_bounds = array<i64: 8, 1>}]} {
    %c0_i32 = arith.constant 0 : i32
    %0 = arith.cmpi eq, %arg1, %c0_i32 : i32
    %1 = arith.extui %0 : i1 to i32
    %c0_i32_0 = arith.constant 0 : i32
    %2 = arith.cmpi ne, %1, %c0_i32_0 : i32
    scf.if %2 {
      %cst_8 = arith.constant 0.000000e+00 : f32
      %12 = vector.broadcast %cst_8 : f32 to vector<8x1xf32>
      %c0_9 = arith.constant 0 : index
      %c0_10 = arith.constant 0 : index
      %13 = vector.load %arg3[%c0_9, %c0_10] : memref<8x1xf32, #tpu.memory_space<vmem>>, vector<8x1xf32>
      tpu.vector_store %arg3[%c0_9, %c0_10], %12 {strides = array<i32>} : memref<8x1xf32, #tpu.memory_space<vmem>>, vector<8x1xf32>,
    } else {
    }
    %c0 = arith.constant 0 : index
    %c0_1 = arith.constant 0 : index
    %3 = vector.load %arg3[%c0, %c0_1] : memref<8x1xf32, #tpu.memory_space<vmem>>, vector<8x1xf32>
    %c0_2 = arith.constant 0 : index
    %c0_3 = arith.constant 0 : index
    %4 = vector.load %arg2[%c0_2, %c0_3] : memref<8x256xf32, #tpu.memory_space<vmem>>, vector<8x256xf32>
    %cst = arith.constant dense<0.000000e+00> : vector<8xf32>
    %5 = vector.multi_reduction <add>, %4, %cst [1] : vector<8x256xf32> to vector<8xf32>
    %6 = vector.shape_cast %5 : vector<8xf32> to vector<8x1xf32>
    %7 = arith.addf %3, %6 : vector<8x1xf32>
    %c0_4 = arith.constant 0 : index
    %c0_5 = arith.constant 0 : index
    %8 = vector.load %arg3[%c0_4, %c0_5] : memref<8x1xf32, #tpu.memory_space<vmem>>, vector<8x1xf32>
    tpu.vector_store %arg3[%c0_4, %c0_5], %7 {strides = array<i32>} : memref<8x1xf32, #tpu.memory_space<vmem>>, vector<8x1xf32>,
    %c0_i32_6 = arith.constant 0 : i32
    %9 = arith.cmpi eq, %arg1, %c0_i32_6 : i32
    %10 = arith.extui %9 : i1 to i32
    %c0_i32_7 = arith.constant 0 : i32
    %11 = arith.cmpi ne, %10, %c0_i32_7 : i32
    scf.if %11 {
      %c0_8 = arith.constant 0 : index
      %c0_9 = arith.constant 0 : index
      %12 = vector.load %arg3[%c0_8, %c0_9] : memref<8x1xf32, #tpu.memory_space<vmem>>, vector<8x1xf32>
      %cst_10 = arith.constant 3.906250e-03 : f32
      %13 = vector.broadcast %cst_10 : f32 to vector<8x1xf32>
      %14 = arith.mulf %12, %13 : vector<8x1xf32>
      %c0_11 = arith.constant 0 : index
      %c0_12 = arith.constant 0 : index
      %15 = vector.load %arg3[%c0_11, %c0_12] : memref<8x1xf32, #tpu.memory_space<vmem>>, vector<8x1xf32>
      tpu.vector_store %arg3[%c0_11, %c0_12], %14 {strides = array<i32>} : memref<8x1xf32, #tpu.memory_space<vmem>>, vector<8x1xf32>,
    } else {
    }
    return
  }
  func.func @transform_0(%arg0: i32, %arg1: i32) -> (i32, i32) {
    %c0_i32 = arith.constant 0 : i32
    return %arg0, %arg1 : i32, i32
  }
  func.func @transform_1(%arg0: i32, %arg1: i32) -> (i32, i32) {
    %c0_i32 = arith.constant 0 : i32
    %c0_i32_0 = arith.constant 0 : i32
    return %arg0, %c0_i32 : i32, i32
  }
}

</mosaic_0001>

<llo_original>
// kernel: tpu_custom_call.1
$region0: #{tpu_custom_call.1}
  #allocation0 [shape = 'u32[]', space=smem, size = 0x4, offset = 0x4, fixed_abs, tag = 'smem constant byte address 0x4 - core index']
  #allocation1 [shape = 'u32[144,128]{1,0:T(1,128)}', space=vmem, size = 0x12000, scoped, tag = 'internal scratch']
  %s0 = inlined_call_operand.hbm [shape: f32[8,256], index: 0, kind: input, shape index: {}]
  %s1 = inlined_call_operand.vmem [shape: f32[8,1], index: 1, kind: output, shape index: {}]
  %s2 = sld [smem:[#allocation0]]
  $region26: #{tpu_custom_call.1} parent=0
    _
  %s4 = ssub.s32 1, %s2
  %s5 = scalar_select 0, %s4, %s2
  $region1: #{tpu_custom_call.1} parent=0
    #allocation2 [shape = 'u8[8192]{0}', space=vmem, size = 0x2000, scoped, tag = 'input window, operand 0, single buffered']
    #allocation3 [shape = 's32[1]{0}', space=sflag, size = 0x4, scoped, tag = 'scoped memory for tpu_custom_call.1']
    %6 = vsyncpa [#allocation3], 0
    // Predicated region
    $region2: #{tpu_custom_call.1} parent=1 // pred_check
      _
    $region3: #{tpu_custom_call.1} parent=1 // pred_check_branch
      %8 = sbr.rel (0) target = $region5
    $region4: #{tpu_custom_call.1} parent=1 // pred_region
      %s10 = ssub.s32 256, 256
      %11 = vsyncadd [#allocation3], %s10
      %s13 = sshll.u32 [#allocation2], 4
      %s14 = int_to_ptr.vmem [resolvable:$true] %s13
      %16 = dma.hbm_to_vmem [thread:$0]  %s0, 256, %s14, [#allocation3]
    $region5: #{tpu_custom_call.1} parent=1 // pred_fallthru
      _
    // Predicated region
    $region6: #{tpu_custom_call.1} parent=1 // pred_check
      _
    $region7: #{tpu_custom_call.1} parent=1 // pred_check_branch
      %18 = sbr.rel (0) target = $region9
    $region8: #{tpu_custom_call.1} parent=1 // pred_region
      %19 = dma.done [#allocation3], 256
    $region9: #{tpu_custom_call.1} parent=1 // pred_fallthru
      _
    %p20 = scmp.eq.s32.totalorder 0, 0
    // Predicated region
    $region10: #{tpu_custom_call.1} parent=1 // pred_check
      %p21 = pneg %p20
    $region11: #{tpu_custom_call.1} parent=1 // pred_check_branch
      %23 = sbr.rel (%p21) target = $region13
    $region12: #{tpu_custom_call.1} parent=1 // pred_region
      %vm24 = vcmask 7168
      %25 = vst.msk [vmem:[%s1] sm:$0xff] %vm24, 0.0
    $region13: #{tpu_custom_call.1} parent=1 // pred_fallthru
      _
    %v26 = vld [vmem:[%s1] sm:$0xff]
    %v27 = vld [vmem:[#allocation2] sm:$0xff]
    %v28 = vld [vmem:[#allocation2 + $0x8] sm:$0xff]
    %v29 = vadd.f32 %v27, %v28
    %30 = vadd.xlane.f32.xlu0 %v29
    %v31 = vpop.xlane.xlu0 %30
    %v32 = vadd.f32 %v26, %v31
    %vm33 = vcmask 7168
    %34 = vst.msk [vmem:[%s1] sm:$0xff] %vm33, %v32
    // Predicated region
    $region14: #{tpu_custom_call.1} parent=1 // pred_check
      %p35 = pneg %p20
    $region15: #{tpu_custom_call.1} parent=1 // pred_check_branch
      %37 = sbr.rel (%p35) target = $region17
    $region16: #{tpu_custom_call.1} parent=1 // pred_region
      %v38 = vld [vmem:[%s1] sm:$0xff]
      %v39 = vmul.f32 %v38, 0.00390625
      %40 = vst.msk [vmem:[%s1] sm:$0xff] %vm33, %v39
    $region17: #{tpu_custom_call.1} parent=1 // pred_fallthru
      _
    // Predicated region
    $region18: #{tpu_custom_call.1} parent=1 // pred_check
      _
    $region19: #{tpu_custom_call.1} parent=1 // pred_check_branch
      %42 = sbr.rel (0) target = $region21
    $region20: #{tpu_custom_call.1} parent=1 // pred_region
      _
    $region21: #{tpu_custom_call.1} parent=1 // pred_fallthru
      _
    // Predicated region
    $region22: #{tpu_custom_call.1} parent=1 // pred_check
      _
    $region23: #{tpu_custom_call.1} parent=1 // pred_check_branch
      %44 = sbr.rel (0) target = $region25
    $region24: #{tpu_custom_call.1} parent=1 // pred_region
      _
    $region25: #{tpu_custom_call.1} parent=1 // pred_fallthru
      _
    %45 = vsyncpa [#allocation3], 1

</llo_original>
